<compile_context>
chip_gen: v6e
topology: v6e:2x2x1
jax: 0.10.0
libtpu: 0.0.40
codegen_flags: <defaults>
</compile_context>

<pallas_src>
import functools

import jax
import jax.numpy as jnp
from jax.experimental import pallas as pl
from jax.experimental.pallas import tpu as pltpu


def _cdiv(a, b):
    return -(-a // b)


def _round_up(x, m):
    return (x + m - 1) // m * m


def _vmem_capacity_bytes():
    """Physical VMEM per core (64 MiB v7x, 128 MiB v5e/v6e); conservative fallback."""
    try:
        info = pltpu.get_tpu_info()
        for attr in ("vmem_capacity_bytes", "vmem_size_bytes", "vmem_bytes"):
            v = getattr(info, attr, None)
            if v:
                return int(v)
    except Exception:
        pass
    return 64 * 1024 * 1024


def _contrastive_kernel(a_ref, o_ref, y_ref, out_ref, *, margin, g, d):
    # a_ref, o_ref: (tb, g*d) embeddings (native dtype), g original rows packed
    #               per 128-lane row when d < 128.
    # y_ref:        (tb, g) f32 labels.
    # out_ref:      (1, 1) f32 SMEM block -> this tile's own slot of the
    #               partial-sum vector (grid axis is fully parallel).
    a = a_ref[...].astype(jnp.float32)
    o = o_ref[...].astype(jnp.float32)
    diff = a - o
    sq = diff * diff                                         # (tb, g*d)

    if g > 1:
        # Per-original-row squared distance = sum of d contiguous lanes.
        # Done as a matmul against a 0/1 selection matrix: the MXU is idle in
        # this bandwidth-bound kernel, so this replaces cross-lane XLU reduces
        # essentially for free. Range-compare (not integer //) for safe lowering.
        lane = jax.lax.broadcasted_iota(jnp.int32, (g * d, g), 0)
        col = jax.lax.broadcasted_iota(jnp.int32, (g * d, g), 1)
        sel = ((lane >= col * d) & (lane < (col + 1) * d)).astype(jnp.float32)
        dist_sq = jnp.dot(sq, sel, preferred_element_type=jnp.float32,
                          precision=jax.lax.Precision.HIGHEST)   # (tb, g)
    else:
        dist_sq = jnp.sum(sq, axis=1, keepdims=True)             # (tb, 1)

    dist = jnp.sqrt(dist_sq)
    mdist = jnp.maximum(margin - dist, 0.0)                      # clamp(margin - d, 0)
    y = y_ref[...]                                               # (tb, g)
    loss = y * dist_sq + (1.0 - y) * (mdist * mdist)
    out_ref[0, 0] = jnp.sum(loss)                                # this tile's partial


def contrastive_loss(emb_anchor, emb_other, y, margin=1.0):
    """Pallas TPU implementation of ContrastiveLoss.forward.

    emb_anchor, emb_other: (B, D) float32 or bfloat16
    y: (B,) labels (0/1, or fractional — the linear blend of the module is kept)
    returns: scalar float32 loss
    """
    B, D = emb_anchor.shape
    dtype = emb_anchor.dtype
    if emb_other.dtype != dtype:
        emb_other = emb_other.astype(dtype)
    itemsize = jnp.dtype(dtype).itemsize

    # Lane-dense packing: g original rows per 128-lane packed row when D < 128.
    g = 128 // D if (D < 128 and 128 % D == 0) else 1
    dp = g * D

    # Per-generation VMEM budget: 48 MiB scoped limit on the 64 MiB part (v7x),
    # ~96 MiB on the 128 MiB parts (v5e / v6e).
    vmem_cap = _vmem_capacity_bytes()
    vmem_limit = max(32 << 20, min(vmem_cap * 3 // 4, 100 << 20))
    # Double-buffered working set per row:
    #   2 embedding inputs (dp * itemsize each) + lane-padded f32 label row (512 B).
    row_vmem = 2 * dp * itemsize + 128 * 4
    tb_cap = max(8, (vmem_limit * 85 // 100) // (2 * row_vmem) // 8 * 8)

    rows = _cdiv(B, g)
    # Balance tiles: big enough to hide the ~0.35us/step overhead; at least 2
    # tiles for non-trivial inputs so both v7x TensorCores get work (parallel grid).
    min_tiles = 2 if rows >= 256 else 1
    ntiles = max(min_tiles, _cdiv(rows, tb_cap))
    tb = max(8, _round_up(_cdiv(rows, ntiles), 8))
    rows_pad = ntiles * tb
    B_pad = rows_pad * g

    y = y.reshape(-1).astype(jnp.float32)
    if B_pad != B:
        pad = B_pad - B
        # Padded rows: zero embeddings and y=1 -> contribute exactly 0 to the loss.
        emb_anchor = jnp.pad(emb_anchor, ((0, pad), (0, 0)))
        emb_other = jnp.pad(emb_other, ((0, pad), (0, 0)))
        y = jnp.pad(y, ((0, pad),), constant_values=1.0)

    # Free reshapes of contiguous row-major arrays (no data movement).
    a_p = emb_anchor.reshape(rows_pad, dp)
    o_p = emb_other.reshape(rows_pad, dp)
    y_p = y.reshape(rows_pad, g)

    kernel = functools.partial(_contrastive_kernel, margin=float(margin), g=g, d=D)

    partials = pl.pallas_call(
        kernel,
        out_shape=jax.ShapeDtypeStruct((ntiles, 1), jnp.float32),
        grid_spec=pltpu.PrefetchScalarGridSpec(
            num_scalar_prefetch=0,
            grid=(ntiles,),
            in_specs=[
                pl.BlockSpec((tb, dp), lambda i: (i, 0)),
                pl.BlockSpec((tb, dp), lambda i: (i, 0)),
                pl.BlockSpec((tb, g), lambda i: (i, 0)),
            ],
            out_specs=pl.BlockSpec((1, 1), lambda i: (i, 0),
                                   memory_space=pltpu.SMEM),
        ),
        compiler_params=pltpu.CompilerParams(
            dimension_semantics=("parallel",),   # independent tiles -> megacore on v7x
            vmem_limit_bytes=int(vmem_limit),
        ),
    )(a_p, o_p, y_p)

    # Tiny epilogue: sum the per-tile partials and fold /2/B into one multiply.
    return jnp.sum(partials) * (0.5 / float(B))


def _reference(emb_anchor, emb_other, y, margin=1.0):
    diff = emb_anchor.astype(jnp.float32) - emb_other.astype(jnp.float32)
    dist_sq = jnp.sum(diff ** 2, axis=1)
    dist = jnp.sqrt(dist_sq)
    mdist = jnp.maximum(margin - dist, 0.0)
    loss = y * dist_sq + (1.0 - y) * mdist ** 2
    return jnp.sum(loss) / 2.0 / emb_anchor.shape[0]


if __name__ == "__main__":
    key = jax.random.PRNGKey(0)
    ks = jax.random.split(key, 9)

    # 1) Small shapes consistent with the module (exercises the lane-dense D<128 path).
    B, D = 8, 32
    emb_anchor = jax.random.normal(ks[0], (B, D), dtype=jnp.float32)
    emb_other = jax.random.normal(ks[1], (B, D), dtype=jnp.float32)
    y = jax.random.bernoulli(ks[2], 0.5, (B,)).astype(jnp.float32)

    loss = contrastive_loss(emb_anchor, emb_other, y, margin=1.0)
    jax.block_until_ready(loss)
    ref = _reference(emb_anchor, emb_other, y, margin=1.0)
    assert jnp.allclose(loss, ref, rtol=1e-4, atol=1e-4), (loss, ref)

    # 2) Batch not a multiple of the packing/tile (exercises the padding path).
    B2, D2 = 20, 32
    a2 = jax.random.normal(ks[3], (B2, D2), dtype=jnp.float32)
    o2 = jax.random.normal(ks[4], (B2, D2), dtype=jnp.float32)
    y2 = jax.random.bernoulli(ks[5], 0.5, (B2,)).astype(jnp.float32)

    loss2 = contrastive_loss(a2, o2, y2, margin=1.0)
    jax.block_until_ready(loss2)
    ref2 = _reference(a2, o2, y2, margin=1.0)
    assert jnp.allclose(loss2, ref2, rtol=1e-4, atol=1e-4), (loss2, ref2)

    # 3) D = 128 (already lane-dense, g == 1 reduction path).
    B3, D3 = 16, 128
    a3 = jax.random.normal(ks[6], (B3, D3), dtype=jnp.float32)
    o3 = jax.random.normal(ks[7], (B3, D3), dtype=jnp.float32)
    y3 = jax.random.bernoulli(ks[8], 0.5, (B3,)).astype(jnp.float32)

    loss3 = contrastive_loss(a3, o3, y3, margin=1.0)
    jax.block_until_ready(loss3)
    ref3 = _reference(a3, o3, y3, margin=1.0)
    assert jnp.allclose(loss3, ref3, rtol=1e-4, atol=1e-4), (loss3, ref3)

    print("KERNEL_OK")
</pallas_src>

<mosaic_0001>
module attributes {stable_mosaic.version = 11 : i64} {
  func.func @_contrastive_kernel(%arg0: i32, %arg1: memref<8x128xf32, #tpu.memory_space<vmem>>, %arg2: memref<8x128xf32, #tpu.memory_space<vmem>>, %arg3: memref<8x4xf32, #tpu.memory_space<vmem>>, %arg4: memref<1x1xf32, #tpu.memory_space<smem>>) attributes {dimension_semantics = [#tpu.dimension_semantics<parallel>], iteration_bounds = array<i64: 1>, scalar_prefetch = 0 : i64, scratch_operands = 0 : i64, tpu.core_type = #tpu.core_type<tc>, window_params = [{transform_indices = @transform_0, window_bounds = array<i64: 8, 128>}, {transform_indices = @transform_1, window_bounds = array<i64: 8, 128>}, {transform_indices = @transform_2, window_bounds = array<i64: 8, 4>}, {transform_indices = @transform_3, window_bounds = array<i64: 1, 1>}]} {
    %c0 = arith.constant 0 : index
    %c0_0 = arith.constant 0 : index
    %0 = vector.load %arg1[%c0, %c0_0] : memref<8x128xf32, #tpu.memory_space<vmem>>, vector<8x128xf32>
    %c0_1 = arith.constant 0 : index
    %c0_2 = arith.constant 0 : index
    %1 = vector.load %arg2[%c0_1, %c0_2] : memref<8x128xf32, #tpu.memory_space<vmem>>, vector<8x128xf32>
    %2 = arith.subf %0, %1 : vector<8x128xf32>
    %3 = arith.mulf %2, %2 : vector<8x128xf32>
    %4 = tpu.iota {dimensions = array<i32: 0>} : vector<128x4xi32>
    %5 = tpu.iota {dimensions = array<i32: 1>} : vector<128x4xi32>
    %c32_i32 = arith.constant 32 : i32
    %6 = vector.broadcast %c32_i32 : i32 to vector<128x4xi32>
    %7 = arith.muli %5, %6 : vector<128x4xi32>
    %8 = arith.cmpi sge, %4, %7 : vector<128x4xi32>
    %c1_i32 = arith.constant 1 : i32
    %9 = vector.broadcast %c1_i32 : i32 to vector<128x4xi32>
    %10 = arith.addi %5, %9 : vector<128x4xi32>
    %c32_i32_3 = arith.constant 32 : i32
    %11 = vector.broadcast %c32_i32_3 : i32 to vector<128x4xi32>
    %12 = arith.muli %10, %11 : vector<128x4xi32>
    %13 = arith.cmpi slt, %4, %12 : vector<128x4xi32>
    %14 = arith.andi %8, %13 : vector<128x4xi1>
    %15 = arith.extui %14 : vector<128x4xi1> to vector<128x4xi32>
    %16 = arith.sitofp %15 : vector<128x4xi32> to vector<128x4xf32>
    %cst = arith.constant dense<0.000000e+00> : vector<8x4xf32>
    %17 = tpu.matmul %3, %16, %cst {dimension_numbers = #tpu.dot_dimension_numbers<[1], [0], [0], [1], [0, 0, 1, 1], [], []>, precision = #tpu.contract_precision<fp32>} : vector<8x128xf32>, vector<128x4xf32>, vector<8x4xf32> -> vector<8x4xf32>
    %18 = math.sqrt %17 : vector<8x4xf32>
    %cst_4 = arith.constant 1.000000e+00 : f32
    %19 = vector.broadcast %cst_4 : f32 to vector<8x4xf32>
    %20 = arith.subf %19, %18 : vector<8x4xf32>
    %cst_5 = arith.constant 0.000000e+00 : f32
    %21 = vector.broadcast %cst_5 : f32 to vector<8x4xf32>
    %22 = arith.maximumf %20, %21 : vector<8x4xf32>
    %c0_6 = arith.constant 0 : index
    %c0_7 = arith.constant 0 : index
    %23 = vector.load %arg3[%c0_6, %c0_7] : memref<8x4xf32, #tpu.memory_space<vmem>>, vector<8x4xf32>
    %24 = arith.mulf %23, %17 : vector<8x4xf32>
    %cst_8 = arith.constant 1.000000e+00 : f32
    %25 = vector.broadcast %cst_8 : f32 to vector<8x4xf32>
    %26 = arith.subf %25, %23 : vector<8x4xf32>
    %27 = arith.mulf %22, %22 : vector<8x4xf32>
    %28 = arith.mulf %26, %27 : vector<8x4xf32>
    %29 = arith.addf %24, %28 : vector<8x4xf32>
    %30 = vector.shape_cast %29 : vector<8x4xf32> to vector<1x8x4xf32>
    %cst_9 = arith.constant dense<0.000000e+00> : vector<1xf32>
    %31 = vector.multi_reduction <add>, %30, %cst_9 [1, 2] : vector<1x8x4xf32> to vector<1xf32>
    %32 = vector.shape_cast %31 : vector<1xf32> to vector<1x1x1xf32>
    %33 = vector.extract %32[0, 0, 0] : f32 from vector<1x1x1xf32>
    %c0_10 = arith.constant 0 : index
    %c0_11 = arith.constant 0 : index
    %34 = memref.load %arg4[%c0_10, %c0_11] : memref<1x1xf32, #tpu.memory_space<smem>>
    memref.store %33, %arg4[%c0_10, %c0_11] : memref<1x1xf32, #tpu.memory_space<smem>>
    return
  }
  func.func @transform_0(%arg0: i32) -> (i32, i32) {
    %c0_i32 = arith.constant 0 : i32
    %c0_i32_0 = arith.constant 0 : i32
    return %arg0, %c0_i32 : i32, i32
  }
  func.func @transform_1(%arg0: i32) -> (i32, i32) {
    %c0_i32 = arith.constant 0 : i32
    %c0_i32_0 = arith.constant 0 : i32
    return %arg0, %c0_i32 : i32, i32
  }
  func.func @transform_2(%arg0: i32) -> (i32, i32) {
    %c0_i32 = arith.constant 0 : i32
    %c0_i32_0 = arith.constant 0 : i32
    return %arg0, %c0_i32 : i32, i32
  }
  func.func @transform_3(%arg0: i32) -> (i32, i32) {
    %c0_i32 = arith.constant 0 : i32
    %c0_i32_0 = arith.constant 0 : i32
    return %arg0, %c0_i32 : i32, i32
  }
}

</mosaic_0001>

<llo_original>
// kernel: tpu_custom_call.1
$region0: #{tpu_custom_call.1}
  #allocation0 [shape = 'u32[]', space=smem, size = 0x4, offset = 0x4, fixed_abs, tag = 'smem constant byte address 0x4 - core index']
  #allocation1 [shape = 'u32[144,128]{1,0:T(1,128)}', space=vmem, size = 0x12000, scoped, tag = 'internal scratch']
  %s0 = inlined_call_operand.vmem [shape: f32[8,128], index: 0, kind: input, shape index: {}]
  %s1 = inlined_call_operand.hbm [shape: f32[8,128], index: 1, kind: input, shape index: {}]
  %s2 = inlined_call_operand.vmem [shape: f32[8,4], index: 2, kind: input, shape index: {}]
  %s3 = inlined_call_operand.hbm [shape: f32[1,1], index: 3, kind: output, shape index: {}]
  %s4 = sld [smem:[#allocation0]]
  $region26: #{tpu_custom_call.1} parent=0
    _
  %s6 = ssub.s32 1, %s4
  %s7 = scalar_select 0, %s6, %s4
  $region1: #{tpu_custom_call.1} parent=0
    #allocation2 [shape = 'u8[4096]{0}', space=vmem, size = 0x1000, scoped, tag = 'input window, operand 1, single buffered']
    #allocation3 [shape = 's32[1]{0}', space=sflag, size = 0x4, scoped, tag = 'scoped memory for tpu_custom_call.1']
    #allocation4 [shape = 's32[1]{0}', space=sflag, size = 0x4, scoped, tag = 'scoped memory for tpu_custom_call.1']
    #allocation5 [shape = 'u8[512]{0}', space=smem, size = 0x200, scoped, tag = 'output window, operand 0, single buffered']
    %8 = vsyncpa [#allocation3], 0
    %9 = vsyncpa [#allocation4], 0
    // Predicated region
    $region2: #{tpu_custom_call.1} parent=1 // pred_check
      _
    $region3: #{tpu_custom_call.1} parent=1 // pred_check_branch
      %11 = sbr.rel (0) target = $region5
    $region4: #{tpu_custom_call.1} parent=1 // pred_region
      _
    $region5: #{tpu_custom_call.1} parent=1 // pred_fallthru
      _
    // Predicated region
    $region6: #{tpu_custom_call.1} parent=1 // pred_check
      _
    $region7: #{tpu_custom_call.1} parent=1 // pred_check_branch
      %13 = sbr.rel (0) target = $region9
    $region8: #{tpu_custom_call.1} parent=1 // pred_region
      %s15 = ssub.s32 128, 128
      %16 = vsyncadd [#allocation3], %s15
      %s18 = sshll.u32 [#allocation2], 4
      %s19 = int_to_ptr.vmem [resolvable:$true] %s18
      %21 = dma.hbm_to_vmem [thread:$0]  %s1, 128, %s19, [#allocation3]
    $region9: #{tpu_custom_call.1} parent=1 // pred_fallthru
      _
    // Predicated region
    $region10: #{tpu_custom_call.1} parent=1 // pred_check
      _
    $region11: #{tpu_custom_call.1} parent=1 // pred_check_branch
      %23 = sbr.rel (0) target = $region13
    $region12: #{tpu_custom_call.1} parent=1 // pred_region
      _
    $region13: #{tpu_custom_call.1} parent=1 // pred_fallthru
      _
    // Predicated region
    $region14: #{tpu_custom_call.1} parent=1 // pred_check
      _
    $region15: #{tpu_custom_call.1} parent=1 // pred_check_branch
      %25 = sbr.rel (0) target = $region17
    $region16: #{tpu_custom_call.1} parent=1 // pred_region
      %26 = dma.done [#allocation3], 128
    $region17: #{tpu_custom_call.1} parent=1 // pred_fallthru
      _
    %v27 = vld [vmem:[%s0] sm:$0xff]
    %v28 = vld [vmem:[#allocation2] sm:$0xff]
    %v29 = vsub.f32 %v27, %v28
    %v30 = vmul.f32 %v29, %v29
    %v31 = vlaneseq
    %v32 = vshrl.u32 %v31, 7
    %v33 = vadd.s32 %v32, 8
    %v34 = vadd.s32 %v32, 16
    %v35 = vadd.s32 %v32, 24
    %v36 = vadd.s32 %v32, 32
    %v37 = vadd.s32 %v32, 40
    %v38 = vadd.s32 %v32, 48
    %v39 = vadd.s32 %v32, 56
    %v40 = vadd.s32 %v32, 64
    %v41 = vadd.s32 %v32, 72
    %v42 = vadd.s32 %v32, 80
    %v43 = vadd.s32 %v32, 88
    %v44 = vadd.s32 %v32, 96
    %v45 = vadd.s32 %v32, 104
    %v46 = vadd.s32 %v32, 112
    %v47 = vadd.s32 %v32, 120
    %v48 = vlaneseq
    %v49 = vand.u32 %v48, 127
    %v50 = vmul.u32 %v49, 32
    %vm51 = vcmp.ge.s32.totalorder %v32, %v50
    %vm52 = vcmp.ge.s32.totalorder %v33, %v50
    %vm53 = vcmp.ge.s32.totalorder %v34, %v50
    %vm54 = vcmp.ge.s32.totalorder %v35, %v50
    %vm55 = vcmp.ge.s32.totalorder %v36, %v50
    %vm56 = vcmp.ge.s32.totalorder %v37, %v50
    %vm57 = vcmp.ge.s32.totalorder %v38, %v50
    %vm58 = vcmp.ge.s32.totalorder %v39, %v50
    %vm59 = vcmp.ge.s32.totalorder %v40, %v50
    %vm60 = vcmp.ge.s32.totalorder %v41, %v50
    %vm61 = vcmp.ge.s32.totalorder %v42, %v50
    %vm62 = vcmp.ge.s32.totalorder %v43, %v50
    %vm63 = vcmp.ge.s32.totalorder %v44, %v50
    %vm64 = vcmp.ge.s32.totalorder %v45, %v50
    %vm65 = vcmp.ge.s32.totalorder %v46, %v50
    %vm66 = vcmp.ge.s32.totalorder %v47, %v50
    %v67 = vadd.s32 %v49, 1
    %v68 = vmul.u32 %v67, 32
    %vm69 = vcmp.lt.s32.totalorder %v32, %v68
    %vm70 = vcmp.lt.s32.totalorder %v33, %v68
    %vm71 = vcmp.lt.s32.totalorder %v34, %v68
    %vm72 = vcmp.lt.s32.totalorder %v35, %v68
    %vm73 = vcmp.lt.s32.totalorder %v36, %v68
    %vm74 = vcmp.lt.s32.totalorder %v37, %v68
    %vm75 = vcmp.lt.s32.totalorder %v38, %v68
    %vm76 = vcmp.lt.s32.totalorder %v39, %v68
    %vm77 = vcmp.lt.s32.totalorder %v40, %v68
    %vm78 = vcmp.lt.s32.totalorder %v41, %v68
    %vm79 = vcmp.lt.s32.totalorder %v42, %v68
    %vm80 = vcmp.lt.s32.totalorder %v43, %v68
    %vm81 = vcmp.lt.s32.totalorder %v44, %v68
    %vm82 = vcmp.lt.s32.totalorder %v45, %v68
    %vm83 = vcmp.lt.s32.totalorder %v46, %v68
    %vm84 = vcmp.lt.s32.totalorder %v47, %v68
    %vm85 = vmand %vm51, %vm69
    %vm86 = vmand %vm52, %vm70
    %vm87 = vmand %vm53, %vm71
    %vm88 = vmand %vm54, %vm72
    %vm89 = vmand %vm55, %vm73
    %vm90 = vmand %vm56, %vm74
    %vm91 = vmand %vm57, %vm75
    %vm92 = vmand %vm58, %vm76
    %vm93 = vmand %vm59, %vm77
    %vm94 = vmand %vm60, %vm78
    %vm95 = vmand %vm61, %vm79
    %vm96 = vmand %vm62, %vm80
    %vm97 = vmand %vm63, %vm81
    %vm98 = vmand %vm64, %vm82
    %vm99 = vmand %vm65, %vm83
    %vm100 = vmand %vm66, %vm84
    %v101 = vsel %vm85, 1, 0
    %v102 = vsel %vm86, 1, 0
    %v103 = vsel %vm87, 1, 0
    %v104 = vsel %vm88, 1, 0
    %v105 = vsel %vm89, 1, 0
    %v106 = vsel %vm90, 1, 0
    %v107 = vsel %vm91, 1, 0
    %v108 = vsel %vm92, 1, 0
    %v109 = vsel %vm93, 1, 0
    %v110 = vsel %vm94, 1, 0
    %v111 = vsel %vm95, 1, 0
    %v112 = vsel %vm96, 1, 0
    %v113 = vsel %vm97, 1, 0
    %v114 = vsel %vm98, 1, 0
    %v115 = vsel %vm99, 1, 0
    %v116 = vsel %vm100, 1, 0
    %v117 = vcvt.s32.f32 %v101
    %v118 = vcvt.s32.f32 %v102
    %v119 = vcvt.s32.f32 %v103
    %v120 = vcvt.s32.f32 %v104
    %v121 = vcvt.s32.f32 %v105
    %v122 = vcvt.s32.f32 %v106
    %v123 = vcvt.s32.f32 %v107
    %v124 = vcvt.s32.f32 %v108
    %v125 = vcvt.s32.f32 %v109
    %v126 = vcvt.s32.f32 %v110
    %v127 = vcvt.s32.f32 %v111
    %v128 = vcvt.s32.f32 %v112
    %v129 = vcvt.s32.f32 %v113
    %v130 = vcvt.s32.f32 %v114
    %v131 = vcvt.s32.f32 %v115
    %v132 = vcvt.s32.f32 %v116
    %133 = vmatprep.subr.mxu0 0.0
    %v134 = vand.u32 %v132, 4294901760
    %135 = vmatpush1.msra.mxu0 %v134
    %136 = vmatprep.subr.mxu0 0.0
    %v137 = vand.u32 %v131, 4294901760
    %138 = vmatpush1.msra.mxu0 %v137
    %139 = vmatprep.subr.mxu0 0.0
    %v140 = vand.u32 %v130, 4294901760
    %141 = vmatpush1.msra.mxu0 %v140
    %142 = vmatprep.subr.mxu0 0.0
    %v143 = vand.u32 %v129, 4294901760
    %144 = vmatpush1.msra.mxu0 %v143
    %145 = vmatprep.subr.mxu0 0.0
    %v146 = vand.u32 %v128, 4294901760
    %147 = vmatpush1.msra.mxu0 %v146
    %148 = vmatprep.subr.mxu0 0.0
    %v149 = vand.u32 %v127, 4294901760
    %150 = vmatpush1.msra.mxu0 %v149
    %151 = vmatprep.subr.mxu0 0.0
    %v152 = vand.u32 %v126, 4294901760
    %153 = vmatpush1.msra.mxu0 %v152
    %154 = vmatprep.subr.mxu0 0.0
    %v155 = vand.u32 %v125, 4294901760
    %156 = vmatpush1.msra.mxu0 %v155
    %157 = vmatprep.subr.mxu0 0.0
    %v158 = vand.u32 %v124, 4294901760
    %159 = vmatpush1.msra.mxu0 %v158
    %160 = vmatprep.subr.mxu0 0.0
    %v161 = vand.u32 %v123, 4294901760
    %162 = vmatpush1.msra.mxu0 %v161
    %163 = vmatprep.subr.mxu0 0.0
    %v164 = vand.u32 %v122, 4294901760
    %165 = vmatpush1.msra.mxu0 %v164
    %166 = vmatprep.subr.mxu0 0.0
    %v167 = vand.u32 %v121, 4294901760
    %168 = vmatpush1.msra.mxu0 %v167
    %169 = vmatprep.subr.mxu0 0.0
    %v170 = vand.u32 %v120, 4294901760
    %171 = vmatpush1.msra.mxu0 %v170
    %172 = vmatprep.subr.mxu0 0.0
    %v173 = vand.u32 %v119, 4294901760
    %174 = vmatpush1.msra.mxu0 %v173
    %175 = vmatprep.subr.mxu0 0.0
    %v176 = vand.u32 %v118, 4294901760
    %177 = vmatpush1.msra.mxu0 %v176
    %178 = vmatprep.subr.mxu0 0.0
    %v179 = vand.u32 %v117, 4294901760
    %180 = vmatpush1.msra.mxu0 %v179
    %181 = vmatprep.subr.mxu0 0.0
    %182 = vmatpush2.msra.mxu0 0.0
    %183 = vmatprep.subr.mxu0 0.0
    %184 = vmatpush2.msra.mxu0 0.0
    %185 = vmatprep.subr.mxu0 0.0
    %186 = vmatpush2.msra.mxu0 0.0
    %187 = vmatprep.subr.mxu0 0.0
    %188 = vmatpush2.msra.mxu0 0.0
    %189 = vmatprep.subr.mxu0 0.0
    %190 = vmatpush2.msra.mxu0 0.0
    %191 = vmatprep.subr.mxu0 0.0
    %192 = vmatpush2.msra.mxu0 0.0
    %193 = vmatprep.subr.mxu0 0.0
    %194 = vmatpush2.msra.mxu0 0.0
    %195 = vmatprep.subr.mxu0 0.0
    %196 = vmatpush2.msra.mxu0 0.0
    %197 = vmatprep.subr.mxu0 0.0
    %198 = vmatpush2.msra.mxu0 0.0
    %199 = vmatprep.subr.mxu0 0.0
    %200 = vmatpush2.msra.mxu0 0.0
    %201 = vmatprep.subr.mxu0 0.0
    %202 = vmatpush2.msra.mxu0 0.0
    %203 = vmatprep.subr.mxu0 0.0
    %204 = vmatpush2.msra.mxu0 0.0
    %205 = vmatprep.subr.mxu0 0.0
    %206 = vmatpush2.msra.mxu0 0.0
    %207 = vmatprep.subr.mxu0 0.0
    %208 = vmatpush2.msra.mxu0 0.0
    %209 = vmatprep.subr.mxu0 0.0
    %210 = vmatpush2.msra.mxu0 0.0
    %211 = vmatprep.subr.mxu0 0.0
    %212 = vmatpush2.msra.mxu0 0.0
    %213 = vmatprep.mubr.f32.mxu0 0.0
    %v214 = vand.u32 %v30, 4294901760
    %v215 = vsub.f32 %v30, %v214
    %v216 = vand.u32 %v215, 4294901760
    %v217 = vsub.f32 %v215, %v216
    %v218 = vand.u32 %v217, 4294901760
    %219 = vmatmul.mubr.f32.gmra.mxu0 %v218
    %v220 = vpop.f32.mrf.mxu0
    %v221 = vadd.f32 0.0, %v220
    %v222 = vpop.f32.mrf.mxu0
    %223 = vdwg.mxu0
    %224 = vmatprep.subr.mxu0 0.0
    %v225 = vand.u32 %v132, 4294901760
    %v226 = vsub.f32 %v132, %v225
    %v227 = vand.u32 %v226, 4294901760
    %v228 = vsub.f32 %v226, %v227
    %v229 = vand.u32 %v228, 4294901760
    %230 = vmatpush1.msra.mxu0 %v229
    %231 = vmatprep.subr.mxu0 0.0
    %v232 = vand.u32 %v131, 4294901760
    %v233 = vsub.f32 %v131, %v232
    %v234 = vand.u32 %v233, 4294901760
    %v235 = vsub.f32 %v233, %v234
    %v236 = vand.u32 %v235, 4294901760
    %237 = vmatpush1.msra.mxu0 %v236
    %238 = vmatprep.subr.mxu0 0.0
    %v239 = vand.u32 %v130, 4294901760
    %v240 = vsub.f32 %v130, %v239
    %v241 = vand.u32 %v240, 4294901760
    %v242 = vsub.f32 %v240, %v241
    %v243 = vand.u32 %v242, 4294901760
    %244 = vmatpush1.msra.mxu0 %v243
    %245 = vmatprep.subr.mxu0 0.0
    %v246 = vand.u32 %v129, 4294901760
    %v247 = vsub.f32 %v129, %v246
    %v248 = vand.u32 %v247, 4294901760
    %v249 = vsub.f32 %v247, %v248
    %v250 = vand.u32 %v249, 4294901760
    %251 = vmatpush1.msra.mxu0 %v250
    %252 = vmatprep.subr.mxu0 0.0
    %v253 = vand.u32 %v128, 4294901760
    %v254 = vsub.f32 %v128, %v253
    %v255 = vand.u32 %v254, 4294901760
    %v256 = vsub.f32 %v254, %v255
    %v257 = vand.u32 %v256, 4294901760
    %258 = vmatpush1.msra.mxu0 %v257
    %259 = vmatprep.subr.mxu0 0.0
    %v260 = vand.u32 %v127, 4294901760
    %v261 = vsub.f32 %v127, %v260
    %v262 = vand.u32 %v261, 4294901760
    %v263 = vsub.f32 %v261, %v262
    %v264 = vand.u32 %v263, 4294901760
    %265 = vmatpush1.msra.mxu0 %v264
    %266 = vmatprep.subr.mxu0 0.0
    %v267 = vand.u32 %v126, 4294901760
    %v268 = vsub.f32 %v126, %v267
    %v269 = vand.u32 %v268, 4294901760
    %v270 = vsub.f32 %v268, %v269
    %v271 = vand.u32 %v270, 4294901760
    %272 = vmatpush1.msra.mxu0 %v271
    %273 = vmatprep.subr.mxu0 0.0
    %v274 = vand.u32 %v125, 4294901760
    %v275 = vsub.f32 %v125, %v274
    %v276 = vand.u32 %v275, 4294901760
    %v277 = vsub.f32 %v275, %v276
    %v278 = vand.u32 %v277, 4294901760
    %279 = vmatpush1.msra.mxu0 %v278
    %280 = vmatprep.subr.mxu0 0.0
    %v281 = vand.u32 %v124, 4294901760
    %v282 = vsub.f32 %v124, %v281
    %v283 = vand.u32 %v282, 4294901760
    %v284 = vsub.f32 %v282, %v283
    %v285 = vand.u32 %v284, 4294901760
    %286 = vmatpush1.msra.mxu0 %v285
    %287 = vmatprep.subr.mxu0 0.0
    %v288 = vand.u32 %v123, 4294901760
    %v289 = vsub.f32 %v123, %v288
    %v290 = vand.u32 %v289, 4294901760
    %v291 = vsub.f32 %v289, %v290
    %v292 = vand.u32 %v291, 4294901760
    %293 = vmatpush1.msra.mxu0 %v292
    %294 = vmatprep.subr.mxu0 0.0
    %v295 = vand.u32 %v122, 4294901760
    %v296 = vsub.f32 %v122, %v295
    %v297 = vand.u32 %v296, 4294901760
    %v298 = vsub.f32 %v296, %v297
    %v299 = vand.u32 %v298, 4294901760
    %300 = vmatpush1.msra.mxu0 %v299
    %301 = vmatprep.subr.mxu0 0.0
    %v302 = vand.u32 %v121, 4294901760
    %v303 = vsub.f32 %v121, %v302
    %v304 = vand.u32 %v303, 4294901760
    %v305 = vsub.f32 %v303, %v304
    %v306 = vand.u32 %v305, 4294901760
    %307 = vmatpush1.msra.mxu0 %v306
    %308 = vmatprep.subr.mxu0 0.0
    %v309 = vand.u32 %v120, 4294901760
    %v310 = vsub.f32 %v120, %v309
    %v311 = vand.u32 %v310, 4294901760
    %v312 = vsub.f32 %v310, %v311
    %v313 = vand.u32 %v312, 4294901760
    %314 = vmatpush1.msra.mxu0 %v313
    %315 = vmatprep.subr.mxu0 0.0
    %v316 = vand.u32 %v119, 4294901760
    %v317 = vsub.f32 %v119, %v316
    %v318 = vand.u32 %v317, 4294901760
    %v319 = vsub.f32 %v317, %v318
    %v320 = vand.u32 %v319, 4294901760
    %321 = vmatpush1.msra.mxu0 %v320
    %322 = vmatprep.subr.mxu0 0.0
    %v323 = vand.u32 %v118, 4294901760
    %v324 = vsub.f32 %v118, %v323
    %v325 = vand.u32 %v324, 4294901760
    %v326 = vsub.f32 %v324, %v325
    %v327 = vand.u32 %v326, 4294901760
    %328 = vmatpush1.msra.mxu0 %v327
    %329 = vmatprep.subr.mxu0 0.0
    %v330 = vand.u32 %v117, 4294901760
    %v331 = vsub.f32 %v117, %v330
    %v332 = vand.u32 %v331, 4294901760
    %v333 = vsub.f32 %v331, %v332
    %v334 = vand.u32 %v333, 4294901760
    %335 = vmatpush1.msra.mxu0 %v334
    %336 = vmatprep.subr.mxu0 0.0
    %337 = vmatpush2.msra.mxu0 0.0
    %338 = vmatprep.subr.mxu0 0.0
    %339 = vmatpush2.msra.mxu0 0.0
    %340 = vmatprep.subr.mxu0 0.0
    %341 = vmatpush2.msra.mxu0 0.0
    %342 = vmatprep.subr.mxu0 0.0
    %343 = vmatpush2.msra.mxu0 0.0
    %344 = vmatprep.subr.mxu0 0.0
    %345 = vmatpush2.msra.mxu0 0.0
    %346 = vmatprep.subr.mxu0 0.0
    %347 = vmatpush2.msra.mxu0 0.0
    %348 = vmatprep.subr.mxu0 0.0
    %349 = vmatpush2.msra.mxu0 0.0
    %350 = vmatprep.subr.mxu0 0.0
    %351 = vmatpush2.msra.mxu0 0.0
    %352 = vmatprep.subr.mxu0 0.0
    %353 = vmatpush2.msra.mxu0 0.0
    %354 = vmatprep.subr.mxu0 0.0
    %355 = vmatpush2.msra.mxu0 0.0
    %356 = vmatprep.subr.mxu0 0.0
    %357 = vmatpush2.msra.mxu0 0.0
    %358 = vmatprep.subr.mxu0 0.0
    %359 = vmatpush2.msra.mxu0 0.0
    %360 = vmatprep.subr.mxu0 0.0
    %361 = vmatpush2.msra.mxu0 0.0
    %362 = vmatprep.subr.mxu0 0.0
    %363 = vmatpush2.msra.mxu0 0.0
    %364 = vmatprep.subr.mxu0 0.0
    %365 = vmatpush2.msra.mxu0 0.0
    %366 = vmatprep.subr.mxu0 0.0
    %367 = vmatpush2.msra.mxu0 0.0
    %368 = vmatprep.mubr.f32.mxu0 0.0
    %v369 = vand.u32 %v30, 4294901760
    %370 = vmatmul.mubr.f32.gmra.mxu0 %v369
    %v371 = vpop.f32.mrf.mxu0
    %v372 = vadd.f32 %v221, %v371
    %v373 = vpop.f32.mrf.mxu0
    %374 = vdwg.mxu0
    %375 = vmatprep.subr.mxu0 0.0
    %v376 = vand.u32 %v132, 4294901760
    %v377 = vsub.f32 %v132, %v376
    %378 = vmatpush1.msra.mxu0 %v377
    %379 = vmatprep.subr.mxu0 0.0
    %v380 = vand.u32 %v131, 4294901760
    %v381 = vsub.f32 %v131, %v380
    %382 = vmatpush1.msra.mxu0 %v381
    %383 = vmatprep.subr.mxu0 0.0
    %v384 = vand.u32 %v130, 4294901760
    %v385 = vsub.f32 %v130, %v384
    %386 = vmatpush1.msra.mxu0 %v385
    %387 = vmatprep.subr.mxu0 0.0
    %v388 = vand.u32 %v129, 4294901760
    %v389 = vsub.f32 %v129, %v388
    %390 = vmatpush1.msra.mxu0 %v389
    %391 = vmatprep.subr.mxu0 0.0
    %v392 = vand.u32 %v128, 4294901760
    %v393 = vsub.f32 %v128, %v392
    %394 = vmatpush1.msra.mxu0 %v393
    %395 = vmatprep.subr.mxu0 0.0
    %v396 = vand.u32 %v127, 4294901760
    %v397 = vsub.f32 %v127, %v396
    %398 = vmatpush1.msra.mxu0 %v397
    %399 = vmatprep.subr.mxu0 0.0
    %v400 = vand.u32 %v126, 4294901760
    %v401 = vsub.f32 %v126, %v400
    %402 = vmatpush1.msra.mxu0 %v401
    %403 = vmatprep.subr.mxu0 0.0
    %v404 = vand.u32 %v125, 4294901760
    %v405 = vsub.f32 %v125, %v404
    %406 = vmatpush1.msra.mxu0 %v405
    %407 = vmatprep.subr.mxu0 0.0
    %v408 = vand.u32 %v124, 4294901760
    %v409 = vsub.f32 %v124, %v408
    %410 = vmatpush1.msra.mxu0 %v409
    %411 = vmatprep.subr.mxu0 0.0
    %v412 = vand.u32 %v123, 4294901760
    %v413 = vsub.f32 %v123, %v412
    %414 = vmatpush1.msra.mxu0 %v413
    %415 = vmatprep.subr.mxu0 0.0
    %v416 = vand.u32 %v122, 4294901760
    %v417 = vsub.f32 %v122, %v416
    %418 = vmatpush1.msra.mxu0 %v417
    %419 = vmatprep.subr.mxu0 0.0
    %v420 = vand.u32 %v121, 4294901760
    %v421 = vsub.f32 %v121, %v420
    %422 = vmatpush1.msra.mxu0 %v421
    %423 = vmatprep.subr.mxu0 0.0
    %v424 = vand.u32 %v120, 4294901760
    %v425 = vsub.f32 %v120, %v424
    %426 = vmatpush1.msra.mxu0 %v425
    %427 = vmatprep.subr.mxu0 0.0
    %v428 = vand.u32 %v119, 4294901760
    %v429 = vsub.f32 %v119, %v428
    %430 = vmatpush1.msra.mxu0 %v429
    %431 = vmatprep.subr.mxu0 0.0
    %v432 = vand.u32 %v118, 4294901760
    %v433 = vsub.f32 %v118, %v432
    %434 = vmatpush1.msra.mxu0 %v433
    %435 = vmatprep.subr.mxu0 0.0
    %v436 = vand.u32 %v117, 4294901760
    %v437 = vsub.f32 %v117, %v436
    %438 = vmatpush1.msra.mxu0 %v437
    %439 = vmatprep.subr.mxu0 0.0
    %440 = vmatpush2.msra.mxu0 0.0
    %441 = vmatprep.subr.mxu0 0.0
    %442 = vmatpush2.msra.mxu0 0.0
    %443 = vmatprep.subr.mxu0 0.0
    %444 = vmatpush2.msra.mxu0 0.0
    %445 = vmatprep.subr.mxu0 0.0
    %446 = vmatpush2.msra.mxu0 0.0
    %447 = vmatprep.subr.mxu0 0.0
    %448 = vmatpush2.msra.mxu0 0.0
    %449 = vmatprep.subr.mxu0 0.0
    %450 = vmatpush2.msra.mxu0 0.0
    %451 = vmatprep.subr.mxu0 0.0
    %452 = vmatpush2.msra.mxu0 0.0
    %453 = vmatprep.subr.mxu0 0.0
    %454 = vmatpush2.msra.mxu0 0.0
    %455 = vmatprep.subr.mxu0 0.0
    %456 = vmatpush2.msra.mxu0 0.0
    %457 = vmatprep.subr.mxu0 0.0
    %458 = vmatpush2.msra.mxu0 0.0
    %459 = vmatprep.subr.mxu0 0.0
    %460 = vmatpush2.msra.mxu0 0.0
    %461 = vmatprep.subr.mxu0 0.0
    %462 = vmatpush2.msra.mxu0 0.0
    %463 = vmatprep.subr.mxu0 0.0
    %464 = vmatpush2.msra.mxu0 0.0
    %465 = vmatprep.subr.mxu0 0.0
    %466 = vmatpush2.msra.mxu0 0.0
    %467 = vmatprep.subr.mxu0 0.0
    %468 = vmatpush2.msra.mxu0 0.0
    %469 = vmatprep.subr.mxu0 0.0
    %470 = vmatpush2.msra.mxu0 0.0
    %471 = vmatprep.mubr.f32.mxu0 0.0
    %v472 = vand.u32 %v30, 4294901760
    %v473 = vsub.f32 %v30, %v472
    %474 = vmatmul.mubr.f32.gmra.mxu0 %v473
    %v475 = vpop.f32.mrf.mxu0
    %v476 = vadd.f32 %v372, %v475
    %v477 = vpop.f32.mrf.mxu0
    %478 = vdwg.mxu0
    %479 = vmatprep.subr.mxu0 0.0
    %v480 = vand.u32 %v132, 4294901760
    %481 = vmatpush1.msra.mxu0 %v480
    %482 = vmatprep.subr.mxu0 0.0
    %v483 = vand.u32 %v131, 4294901760
    %484 = vmatpush1.msra.mxu0 %v483
    %485 = vmatprep.subr.mxu0 0.0
    %v486 = vand.u32 %v130, 4294901760
    %487 = vmatpush1.msra.mxu0 %v486
    %488 = vmatprep.subr.mxu0 0.0
    %v489 = vand.u32 %v129, 4294901760
    %490 = vmatpush1.msra.mxu0 %v489
    %491 = vmatprep.subr.mxu0 0.0
    %v492 = vand.u32 %v128, 4294901760
    %493 = vmatpush1.msra.mxu0 %v492
    %494 = vmatprep.subr.mxu0 0.0
    %v495 = vand.u32 %v127, 4294901760
    %496 = vmatpush1.msra.mxu0 %v495
    %497 = vmatprep.subr.mxu0 0.0
    %v498 = vand.u32 %v126, 4294901760
    %499 = vmatpush1.msra.mxu0 %v498
    %500 = vmatprep.subr.mxu0 0.0
    %v501 = vand.u32 %v125, 4294901760
    %502 = vmatpush1.msra.mxu0 %v501
    %503 = vmatprep.subr.mxu0 0.0
    %v504 = vand.u32 %v124, 4294901760
    %505 = vmatpush1.msra.mxu0 %v504
    %506 = vmatprep.subr.mxu0 0.0
    %v507 = vand.u32 %v123, 4294901760
    %508 = vmatpush1.msra.mxu0 %v507
    %509 = vmatprep.subr.mxu0 0.0
    %v510 = vand.u32 %v122, 4294901760
    %511 = vmatpush1.msra.mxu0 %v510
    %512 = vmatprep.subr.mxu0 0.0
    %v513 = vand.u32 %v121, 4294901760
    %514 = vmatpush1.msra.mxu0 %v513
    %515 = vmatprep.subr.mxu0 0.0
    %v516 = vand.u32 %v120, 4294901760
    %517 = vmatpush1.msra.mxu0 %v516
    %518 = vmatprep.subr.mxu0 0.0
    %v519 = vand.u32 %v119, 4294901760
    %520 = vmatpush1.msra.mxu0 %v519
    %521 = vmatprep.subr.mxu0 0.0
    %v522 = vand.u32 %v118, 4294901760
    %523 = vmatpush1.msra.mxu0 %v522
    %524 = vmatprep.subr.mxu0 0.0
    %v525 = vand.u32 %v117, 4294901760
    %526 = vmatpush1.msra.mxu0 %v525
    %527 = vmatprep.subr.mxu0 0.0
    %528 = vmatpush2.msra.mxu0 0.0
    %529 = vmatprep.subr.mxu0 0.0
    %530 = vmatpush2.msra.mxu0 0.0
    %531 = vmatprep.subr.mxu0 0.0
    %532 = vmatpush2.msra.mxu0 0.0
    %533 = vmatprep.subr.mxu0 0.0
    %534 = vmatpush2.msra.mxu0 0.0
    %535 = vmatprep.subr.mxu0 0.0
    %536 = vmatpush2.msra.mxu0 0.0
    %537 = vmatprep.subr.mxu0 0.0
    %538 = vmatpush2.msra.mxu0 0.0
    %539 = vmatprep.subr.mxu0 0.0
    %540 = vmatpush2.msra.mxu0 0.0
    %541 = vmatprep.subr.mxu0 0.0
    %542 = vmatpush2.msra.mxu0 0.0
    %543 = vmatprep.subr.mxu0 0.0
    %544 = vmatpush2.msra.mxu0 0.0
    %545 = vmatprep.subr.mxu0 0.0
    %546 = vmatpush2.msra.mxu0 0.0
    %547 = vmatprep.subr.mxu0 0.0
    %548 = vmatpush2.msra.mxu0 0.0
    %549 = vmatprep.subr.mxu0 0.0
    %550 = vmatpush2.msra.mxu0 0.0
    %551 = vmatprep.subr.mxu0 0.0
    %552 = vmatpush2.msra.mxu0 0.0
    %553 = vmatprep.subr.mxu0 0.0
    %554 = vmatpush2.msra.mxu0 0.0
    %555 = vmatprep.subr.mxu0 0.0
    %556 = vmatpush2.msra.mxu0 0.0
    %557 = vmatprep.subr.mxu0 0.0
    %558 = vmatpush2.msra.mxu0 0.0
    %559 = vmatprep.mubr.f32.mxu0 0.0
    %v560 = vand.u32 %v30, 4294901760
    %v561 = vsub.f32 %v30, %v560
    %v562 = vand.u32 %v561, 4294901760
    %563 = vmatmul.mubr.f32.gmra.mxu0 %v562
    %v564 = vpop.f32.mrf.mxu0
    %v565 = vadd.f32 %v476, %v564
    %v566 = vpop.f32.mrf.mxu0
    %567 = vdwg.mxu0
    %568 = vmatprep.subr.mxu0 0.0
    %v569 = vand.u32 %v132, 4294901760
    %v570 = vsub.f32 %v132, %v569
    %v571 = vand.u32 %v570, 4294901760
    %572 = vmatpush1.msra.mxu0 %v571
    %573 = vmatprep.subr.mxu0 0.0
    %v574 = vand.u32 %v131, 4294901760
    %v575 = vsub.f32 %v131, %v574
    %v576 = vand.u32 %v575, 4294901760
    %577 = vmatpush1.msra.mxu0 %v576
    %578 = vmatprep.subr.mxu0 0.0
    %v579 = vand.u32 %v130, 4294901760
    %v580 = vsub.f32 %v130, %v579
    %v581 = vand.u32 %v580, 4294901760
    %582 = vmatpush1.msra.mxu0 %v581
    %583 = vmatprep.subr.mxu0 0.0
    %v584 = vand.u32 %v129, 4294901760
    %v585 = vsub.f32 %v129, %v584
    %v586 = vand.u32 %v585, 4294901760
    %587 = vmatpush1.msra.mxu0 %v586
    %588 = vmatprep.subr.mxu0 0.0
    %v589 = vand.u32 %v128, 4294901760
    %v590 = vsub.f32 %v128, %v589
    %v591 = vand.u32 %v590, 4294901760
    %592 = vmatpush1.msra.mxu0 %v591
    %593 = vmatprep.subr.mxu0 0.0
    %v594 = vand.u32 %v127, 4294901760
    %v595 = vsub.f32 %v127, %v594
    %v596 = vand.u32 %v595, 4294901760
    %597 = vmatpush1.msra.mxu0 %v596
    %598 = vmatprep.subr.mxu0 0.0
    %v599 = vand.u32 %v126, 4294901760
    %v600 = vsub.f32 %v126, %v599
    %v601 = vand.u32 %v600, 4294901760
    %602 = vmatpush1.msra.mxu0 %v601
    %603 = vmatprep.subr.mxu0 0.0
    %v604 = vand.u32 %v125, 4294901760
    %v605 = vsub.f32 %v125, %v604
    %v606 = vand.u32 %v605, 4294901760
    %607 = vmatpush1.msra.mxu0 %v606
    %608 = vmatprep.subr.mxu0 0.0
    %v609 = vand.u32 %v124, 4294901760
    %v610 = vsub.f32 %v124, %v609
    %v611 = vand.u32 %v610, 4294901760
    %612 = vmatpush1.msra.mxu0 %v611
    %613 = vmatprep.subr.mxu0 0.0
    %v614 = vand.u32 %v123, 4294901760
    %v615 = vsub.f32 %v123, %v614
    %v616 = vand.u32 %v615, 4294901760
    %617 = vmatpush1.msra.mxu0 %v616
    %618 = vmatprep.subr.mxu0 0.0
    %v619 = vand.u32 %v122, 4294901760
    %v620 = vsub.f32 %v122, %v619
    %v621 = vand.u32 %v620, 4294901760
    %622 = vmatpush1.msra.mxu0 %v621
    %623 = vmatprep.subr.mxu0 0.0
    %v624 = vand.u32 %v121, 4294901760
    %v625 = vsub.f32 %v121, %v624
    %v626 = vand.u32 %v625, 4294901760
    %627 = vmatpush1.msra.mxu0 %v626
    %628 = vmatprep.subr.mxu0 0.0
    %v629 = vand.u32 %v120, 4294901760
    %v630 = vsub.f32 %v120, %v629
    %v631 = vand.u32 %v630, 4294901760
    %632 = vmatpush1.msra.mxu0 %v631
    %633 = vmatprep.subr.mxu0 0.0
    %v634 = vand.u32 %v119, 4294901760
    %v635 = vsub.f32 %v119, %v634
    %v636 = vand.u32 %v635, 4294901760
    %637 = vmatpush1.msra.mxu0 %v636
    %638 = vmatprep.subr.mxu0 0.0
    %v639 = vand.u32 %v118, 4294901760
    %v640 = vsub.f32 %v118, %v639
    %v641 = vand.u32 %v640, 4294901760
    %642 = vmatpush1.msra.mxu0 %v641
    %643 = vmatprep.subr.mxu0 0.0
    %v644 = vand.u32 %v117, 4294901760
    %v645 = vsub.f32 %v117, %v644
    %v646 = vand.u32 %v645, 4294901760
    %647 = vmatpush1.msra.mxu0 %v646
    %648 = vmatprep.subr.mxu0 0.0
    %649 = vmatpush2.msra.mxu0 0.0
    %650 = vmatprep.subr.mxu0 0.0
    %651 = vmatpush2.msra.mxu0 0.0
    %652 = vmatprep.subr.mxu0 0.0
    %653 = vmatpush2.msra.mxu0 0.0
    %654 = vmatprep.subr.mxu0 0.0
    %655 = vmatpush2.msra.mxu0 0.0
    %656 = vmatprep.subr.mxu0 0.0
    %657 = vmatpush2.msra.mxu0 0.0
    %658 = vmatprep.subr.mxu0 0.0
    %659 = vmatpush2.msra.mxu0 0.0
    %660 = vmatprep.subr.mxu0 0.0
    %661 = vmatpush2.msra.mxu0 0.0
    %662 = vmatprep.subr.mxu0 0.0
    %663 = vmatpush2.msra.mxu0 0.0
    %664 = vmatprep.subr.mxu0 0.0
    %665 = vmatpush2.msra.mxu0 0.0
    %666 = vmatprep.subr.mxu0 0.0
    %667 = vmatpush2.msra.mxu0 0.0
    %668 = vmatprep.subr.mxu0 0.0
    %669 = vmatpush2.msra.mxu0 0.0
    %670 = vmatprep.subr.mxu0 0.0
    %671 = vmatpush2.msra.mxu0 0.0
    %672 = vmatprep.subr.mxu0 0.0
    %673 = vmatpush2.msra.mxu0 0.0
    %674 = vmatprep.subr.mxu0 0.0
    %675 = vmatpush2.msra.mxu0 0.0
    %676 = vmatprep.subr.mxu0 0.0
    %677 = vmatpush2.msra.mxu0 0.0
    %678 = vmatprep.subr.mxu0 0.0
    %679 = vmatpush2.msra.mxu0 0.0
    %680 = vmatprep.mubr.f32.mxu0 0.0
    %v681 = vand.u32 %v30, 4294901760
    %682 = vmatmul.mubr.f32.gmra.mxu0 %v681
    %v683 = vpop.f32.mrf.mxu0
    %v684 = vadd.f32 %v565, %v683
    %v685 = vpop.f32.mrf.mxu0
    %686 = vdwg.mxu0
    %687 = vmatprep.subr.mxu0 0.0
    %v688 = vand.u32 %v132, 4294901760
    %689 = vmatpush1.msra.mxu0 %v688
    %690 = vmatprep.subr.mxu0 0.0
    %v691 = vand.u32 %v131, 4294901760
    %692 = vmatpush1.msra.mxu0 %v691
    %693 = vmatprep.subr.mxu0 0.0
    %v694 = vand.u32 %v130, 4294901760
    %695 = vmatpush1.msra.mxu0 %v694
    %696 = vmatprep.subr.mxu0 0.0
    %v697 = vand.u32 %v129, 4294901760
    %698 = vmatpush1.msra.mxu0 %v697
    %699 = vmatprep.subr.mxu0 0.0
    %v700 = vand.u32 %v128, 4294901760
    %701 = vmatpush1.msra.mxu0 %v700
    %702 = vmatprep.subr.mxu0 0.0
    %v703 = vand.u32 %v127, 4294901760
    %704 = vmatpush1.msra.mxu0 %v703
    %705 = vmatprep.subr.mxu0 0.0
    %v706 = vand.u32 %v126, 4294901760
    %707 = vmatpush1.msra.mxu0 %v706
    %708 = vmatprep.subr.mxu0 0.0
    %v709 = vand.u32 %v125, 4294901760
    %710 = vmatpush1.msra.mxu0 %v709
    %711 = vmatprep.subr.mxu0 0.0
    %v712 = vand.u32 %v124, 4294901760
    %713 = vmatpush1.msra.mxu0 %v712
    %714 = vmatprep.subr.mxu0 0.0
    %v715 = vand.u32 %v123, 4294901760
    %716 = vmatpush1.msra.mxu0 %v715
    %717 = vmatprep.subr.mxu0 0.0
    %v718 = vand.u32 %v122, 4294901760
    %719 = vmatpush1.msra.mxu0 %v718
    %720 = vmatprep.subr.mxu0 0.0
    %v721 = vand.u32 %v121, 4294901760
    %722 = vmatpush1.msra.mxu0 %v721
    %723 = vmatprep.subr.mxu0 0.0
    %v724 = vand.u32 %v120, 4294901760
    %725 = vmatpush1.msra.mxu0 %v724
    %726 = vmatprep.subr.mxu0 0.0
    %v727 = vand.u32 %v119, 4294901760
    %728 = vmatpush1.msra.mxu0 %v727
    %729 = vmatprep.subr.mxu0 0.0
    %v730 = vand.u32 %v118, 4294901760
    %731 = vmatpush1.msra.mxu0 %v730
    %732 = vmatprep.subr.mxu0 0.0
    %v733 = vand.u32 %v117, 4294901760
    %734 = vmatpush1.msra.mxu0 %v733
    %735 = vmatprep.subr.mxu0 0.0
    %736 = vmatpush2.msra.mxu0 0.0
    %737 = vmatprep.subr.mxu0 0.0
    %738 = vmatpush2.msra.mxu0 0.0
    %739 = vmatprep.subr.mxu0 0.0
    %740 = vmatpush2.msra.mxu0 0.0
    %741 = vmatprep.subr.mxu0 0.0
    %742 = vmatpush2.msra.mxu0 0.0
    %743 = vmatprep.subr.mxu0 0.0
    %744 = vmatpush2.msra.mxu0 0.0
    %745 = vmatprep.subr.mxu0 0.0
    %746 = vmatpush2.msra.mxu0 0.0
    %747 = vmatprep.subr.mxu0 0.0
    %748 = vmatpush2.msra.mxu0 0.0
    %749 = vmatprep.subr.mxu0 0.0
    %750 = vmatpush2.msra.mxu0 0.0
    %751 = vmatprep.subr.mxu0 0.0
    %752 = vmatpush2.msra.mxu0 0.0
    %753 = vmatprep.subr.mxu0 0.0
    %754 = vmatpush2.msra.mxu0 0.0
    %755 = vmatprep.subr.mxu0 0.0
    %756 = vmatpush2.msra.mxu0 0.0
    %757 = vmatprep.subr.mxu0 0.0
    %758 = vmatpush2.msra.mxu0 0.0
    %759 = vmatprep.subr.mxu0 0.0
    %760 = vmatpush2.msra.mxu0 0.0
    %761 = vmatprep.subr.mxu0 0.0
    %762 = vmatpush2.msra.mxu0 0.0
    %763 = vmatprep.subr.mxu0 0.0
    %764 = vmatpush2.msra.mxu0 0.0
    %765 = vmatprep.subr.mxu0 0.0
    %766 = vmatpush2.msra.mxu0 0.0
    %767 = vmatprep.mubr.f32.mxu0 0.0
    %v768 = vand.u32 %v30, 4294901760
    %769 = vmatmul.mubr.f32.gmra.mxu0 %v768
    %v770 = vpop.f32.mrf.mxu0
    %v771 = vadd.f32 %v684, %v770
    %v772 = vpop.f32.mrf.mxu0
    %773 = vdwg.mxu0
    %v774 = vrsqrt.pop %v771
    %v775 = vmul.f32 %v771, %v774
    %vm776 = vcmp.eq.f32.partialorder %v771, inf
    %v777 = vsel %vm776, %v771, %v775
    %vm778 = vcmp.eq.f32.partialorder %v771, 0.0
    %v779 = vand.u32 %v771, 2147483648
    %v780 = vsel %vm778, %v779, %v777
    %v781 = vsub.f32 1.0, %v780
    %v782 = vmax.f32 %v781, 0.0
    %v783 = vld [vmem:[%s2] sm:$0xff]
    %v784 = vmul.f32 %v783, %v771
    %v785 = vsub.f32 1.0, %v783
    %v786 = vmul.f32 %v782, %v782
    %v787 = vmul.f32 %v785, %v786
    %v788 = vadd.f32 %v784, %v787
    %vm789 = vcmask 31744
    %v790 = vsel %vm789, %v788, 0.0
    %791 = vadd.xlane.f32.xlu0 %v790
    %v792 = vpop.xlane.xlu0 %791
    %v793 = vrot.slane %v792, 4
    %v794 = vadd.f32 %v792, %v793
    %v795 = vrot.slane %v794, 2
    %v796 = vadd.f32 %v794, %v795
    %v797 = vrot.slane %v796, 1
    %v798 = vadd.f32 %v796, %v797
    %s799 = vtos %v798
    %s800 = scalar_lea.smem [#allocation5], 0
    %801 = sst [smem:[%s800]] %s799
    // Predicated region
    $region18: #{tpu_custom_call.1} parent=1 // pred_check
      _
    $region19: #{tpu_custom_call.1} parent=1 // pred_check_branch
      %803 = sbr.rel (0) target = $region21
    $region20: #{tpu_custom_call.1} parent=1 // pred_region
      %s805 = ssub.s32 16, 16
      %806 = vsyncadd [#allocation4], %s805
      %809 = dma.smem_to_hbm [#allocation5], 16, %s3, [#allocation4]
    $region21: #{tpu_custom_call.1} parent=1 // pred_fallthru
      _
    // Predicated region
    $region22: #{tpu_custom_call.1} parent=1 // pred_check
      _
    $region23: #{tpu_custom_call.1} parent=1 // pred_check_branch
      %811 = sbr.rel (0) target = $region25
    $region24: #{tpu_custom_call.1} parent=1 // pred_region
      %812 = dma.done [#allocation4], 16
    $region25: #{tpu_custom_call.1} parent=1 // pred_fallthru
      _
    %813 = sfence
    %814 = vsyncpa [#allocation3], 1
    %815 = vsyncpa [#allocation4], 1

</llo_original>
